<compile_context>
chip_gen: v7x
topology: tpu7x:2x2x1
jax: 0.10.0
libtpu: 0.0.40
codegen_flags: <defaults>
</compile_context>

<pallas_src>
import math
import functools

import jax
import jax.numpy as jnp
from jax import lax
from jax.experimental import pallas as pl
from jax.experimental.pallas import tpu as pltpu


def _embedding_kernel(ids_ref, pe_ref, table_ref, out_ref, *, precision):
    ids = ids_ref[...]                                     # (ts, 1) int32
    ts = ids.shape[0]
    vocab = table_ref.shape[0]
    # Resident-table gather via one-hot matmul. Exact: LHS entries are exactly
    # 0/1 and the pre-truncated table entries are integer-valued. Out-of-range
    # ids select an all-zero row (PE only) instead of faulting like torch.
    cols = lax.broadcasted_iota(jnp.int32, (ts, vocab), 1)
    one_hot = (ids == cols).astype(table_ref.dtype)        # (ts, V)
    rows = jnp.dot(one_hot, table_ref[...],
                   preferred_element_type=jnp.float32,
                   precision=precision)                    # (ts, D) f32 gather
    out_ref[...] = rows + pe_ref[...]
    # TODO(synk): nn.Dropout(p=0.1) is identity here (eval mode); torch
    # training-mode dropout RNG is not reproduced.


def _pick_seq_tile(seq_len, cap=512):
    """Largest tile <= cap dividing seq_len that is a multiple of 8 (falls back
    to the full sequence length, which is always a legal full-dim block)."""
    cap = min(cap, seq_len)
    for t in range(cap, 0, -1):
        if seq_len % t == 0 and (t % 8 == 0 or t == seq_len):
            return t
    return seq_len


def embedding_forward(input_ids, emb_table, pe, vocab_size):
    """input_ids: (S, B) int; emb_table: (V, D) f32; pe: (max_len, D) f32.
    Returns (S, B, D) float32 matching the PyTorch module (eval mode)."""
    S, B = input_ids.shape
    V, D = emb_table.shape
    assert pe.shape[0] >= S, "sequence length exceeds positional-encoding max_len"

    # Fold scale + int32 truncation into the table (exact: gather-then-f(x) ==
    # f(table)-then-gather). torch: (emb * sqrt(vocab)).type(IntTensor)
    # truncates toward zero, then promotes back to float when the f32 PE is
    # added.
    scale = math.sqrt(float(vocab_size))
    table_q = jnp.trunc(emb_table.astype(jnp.float32) * scale)

    # Integer-valued entries with |v| <= 256 are exactly representable in bf16,
    # so the one-hot gather is exact in a single bf16 MXU pass (and halves the
    # resident-table VMEM). Otherwise keep the exact f32 + HIGHEST path.
    precision = lax.Precision.HIGHEST
    try:
        bf16_ok = bool(jnp.max(jnp.abs(table_q)) <= 256.0)
    except Exception:  # abstract value under tracing -> keep exact f32 path
        bf16_ok = False
    if bf16_ok:
        table_q = table_q.astype(jnp.bfloat16)
        precision = None  # single-pass bf16 matmul, exact for this data

    ts = _pick_seq_tile(S)
    n_j = S // ts

    # Reorder ids so each grid step (j, b) reads a contiguous (ts, 1) block.
    # This tiny int32 shuffle (4*S*B bytes) replaces the old (S*B, D) f32 PE
    # repeat in HBM.
    ids_r = (input_ids.astype(jnp.int32)
             .reshape(n_j, ts, B).transpose(0, 2, 1).reshape(n_j, B, ts, 1))
    pe_s = pe[:S].astype(jnp.float32)

    kernel = functools.partial(_embedding_kernel, precision=precision)

    # VMEM budget: the table is still double-buffered by the pipeline even
    # though its block index is constant, so count it twice. Only raise the
    # scoped limit when needed and stay well under physical VMEM (64 MiB/TC on
    # v7x).
    itb = table_q.dtype.itemsize
    est = (2 * V * D * itb                      # resident table (x2 buffers)
           + 2 * (ts * D * 4 + ts * 4 + ts * D * 4)   # pe / ids / out tiles
           + ts * V * itb                       # one-hot intermediate
           + (1 << 20))                         # slack
    cparams = dict(dimension_semantics=("parallel", "parallel"))
    if est > (16 << 20):
        phys = 64 << 20
        try:
            phys = int(pltpu.get_tpu_info().vmem_capacity_bytes)
        except Exception:
            pass
        cparams["vmem_limit_bytes"] = int(min(est + (8 << 20), phys * 3 // 4))
    # TODO(synk): for vocabularies beyond a few thousand rows the resident-table
    # one-hot gather should switch to a manually double-buffered DMA row gather
    # (memory_space=pl.ANY table + 1-D scalar-prefetched ids); not needed here.

    out4 = pl.pallas_call(
        kernel,
        out_shape=jax.ShapeDtypeStruct((S, B, 1, D), jnp.float32),
        grid=(n_j, B),  # b innermost -> PE/table blocks are not re-fetched per b
        in_specs=[
            pl.BlockSpec((None, None, ts, 1), lambda j, b: (j, b, 0, 0)),  # ids
            pl.BlockSpec((ts, D), lambda j, b: (j, 0)),                    # PE rows
            pl.BlockSpec((V, D), lambda j, b: (0, 0)),                     # table (VMEM-resident)
        ],
        out_specs=pl.BlockSpec((ts, None, None, D), lambda j, b: (j, b, 0, 0)),
        compiler_params=pltpu.CompilerParams(**cparams),
    )(ids_r, pe_s, table_q)

    # (S, B, 1, D) -> (S, B, D) is a free, layout-preserving squeeze.
    return out4.reshape(S, B, D)


def make_positional_encoding(d_model, max_len=5000):
    # Same construction as PositionalEncoding.__init__ (buffer, built in JAX).
    pos = jnp.arange(max_len, dtype=jnp.float32)[:, None]
    div = jnp.exp(jnp.arange(0, d_model, 2, dtype=jnp.float32)
                  * (-math.log(10000.0) / d_model))
    pe = jnp.zeros((max_len, d_model), dtype=jnp.float32)
    pe = pe.at[:, 0::2].set(jnp.sin(pos * div))
    pe = pe.at[:, 1::2].set(jnp.cos(pos * div))
    return pe


if __name__ == "__main__":
    vocab_size = 64
    d_model = 128
    seq_len = 128
    batch = 4

    key = jax.random.PRNGKey(0)
    k_emb, k_ids = jax.random.split(key)
    # nn.Embedding default init: weights ~ N(0, 1).
    emb_table = jax.random.normal(k_emb, (vocab_size, d_model), dtype=jnp.float32)
    input_ids = jax.random.randint(k_ids, (seq_len, batch), 0, vocab_size,
                                   dtype=jnp.int32)
    pe = make_positional_encoding(d_model)

    out = embedding_forward(input_ids, emb_table, pe, vocab_size)
    out = jax.block_until_ready(out)

    # Pure-JAX reference for correctness (eval-mode PyTorch semantics).
    scale = math.sqrt(float(vocab_size))
    ref = jnp.take(emb_table, input_ids, axis=0) * scale
    ref = ref.astype(jnp.int32).astype(jnp.float32) + pe[:seq_len][:, None, :]

    assert out.shape == (seq_len, batch, d_model)
    assert out.dtype == jnp.float32
    assert jnp.allclose(out, ref), "Pallas kernel output mismatch vs reference"
    print("KERNEL_OK")
</pallas_src>

<mosaic_0001>
module attributes {stable_mosaic.version = 11 : i64} {
  func.func @_embedding_kernel(%arg0: i32, %arg1: i32, %arg2: memref<1x1x128x1xi32, #tpu.memory_space<vmem>>, %arg3: memref<128x128xf32, #tpu.memory_space<vmem>>, %arg4: memref<64x128xbf16, #tpu.memory_space<vmem>>, %arg5: memref<128x1x1x128xf32, #tpu.memory_space<vmem>>) attributes {dimension_semantics = [#tpu.dimension_semantics<parallel>, #tpu.dimension_semantics<parallel>], iteration_bounds = array<i64: 1, 4>, scalar_prefetch = 0 : i64, scratch_operands = 0 : i64, tpu.core_type = #tpu.core_type<tc>, window_params = [{transform_indices = @transform_0, window_bounds = array<i64: 1, 1, 128, 1>}, {transform_indices = @transform_1, window_bounds = array<i64: 128, 128>}, {pipeline_mode = #tpu.pipeline_mode<synchronous>, transform_indices = @transform_2, window_bounds = array<i64: 64, 128>}, {transform_indices = @transform_3, window_bounds = array<i64: 128, 1, 1, 128>}]} {
    %c0 = arith.constant 0 : index
    %c0_0 = arith.constant 0 : index
    %c0_1 = arith.constant 0 : index
    %c0_2 = arith.constant 0 : index
    %0 = vector.load %arg2[%c0, %c0_0, %c0_1, %c0_2] : memref<1x1x128x1xi32, #tpu.memory_space<vmem>>, vector<1x1x128x1xi32>
    %1 = vector.shape_cast %0 : vector<1x1x128x1xi32> to vector<128x1xi32>
    %2 = tpu.iota {dimensions = array<i32: 1>} : vector<128x64xi32>
    %3 = vector.broadcast %1 : vector<128x1xi32> to vector<128x64xi32>
    %4 = arith.cmpi eq, %3, %2 : vector<128x64xi32>
    %5 = arith.extui %4 : vector<128x64xi1> to vector<128x64xi32>
    %6 = arith.sitofp %5 : vector<128x64xi32> to vector<128x64xf32>
    %7 = arith.truncf %6 : vector<128x64xf32> to vector<128x64xbf16>
    %c0_3 = arith.constant 0 : index
    %c0_4 = arith.constant 0 : index
    %8 = vector.load %arg4[%c0_3, %c0_4] : memref<64x128xbf16, #tpu.memory_space<vmem>>, vector<64x128xbf16>
    %cst = arith.constant dense<0.000000e+00> : vector<128x128xf32>
    %9 = tpu.matmul %7, %8, %cst {dimension_numbers = #tpu.dot_dimension_numbers<[1], [0], [0], [1], [0, 0, 1, 1], [], []>} : vector<128x64xbf16>, vector<64x128xbf16>, vector<128x128xf32> -> vector<128x128xf32>
    %c0_5 = arith.constant 0 : index
    %c0_6 = arith.constant 0 : index
    %10 = vector.load %arg3[%c0_5, %c0_6] : memref<128x128xf32, #tpu.memory_space<vmem>>, vector<128x128xf32>
    %11 = arith.addf %9, %10 : vector<128x128xf32>
    %c0_7 = arith.constant 0 : index
    %c0_8 = arith.constant 0 : index
    %c0_9 = arith.constant 0 : index
    %c0_10 = arith.constant 0 : index
    %12 = vector.load %arg5[%c0_7, %c0_8, %c0_9, %c0_10] : memref<128x1x1x128xf32, #tpu.memory_space<vmem>>, vector<128x1x1x128xf32>
    %13 = vector.shape_cast %12 : vector<128x1x1x128xf32> to vector<128x128xf32>
    %14 = vector.shape_cast %11 : vector<128x128xf32> to vector<128x1x1x128xf32>
    tpu.vector_store %arg5[%c0_7, %c0_8, %c0_9, %c0_10], %14 {strides = array<i32>} : memref<128x1x1x128xf32, #tpu.memory_space<vmem>>, vector<128x1x1x128xf32>,
    return
  }
  func.func @transform_0(%arg0: i32, %arg1: i32) -> (i32, i32, i32, i32) {
    %c0_i32 = arith.constant 0 : i32
    %c0_i32_0 = arith.constant 0 : i32
    %c0_i32_1 = arith.constant 0 : i32
    return %arg0, %arg1, %c0_i32, %c0_i32_0 : i32, i32, i32, i32
  }
  func.func @transform_1(%arg0: i32, %arg1: i32) -> (i32, i32) {
    %c0_i32 = arith.constant 0 : i32
    %c0_i32_0 = arith.constant 0 : i32
    return %arg0, %c0_i32 : i32, i32
  }
  func.func @transform_2(%arg0: i32, %arg1: i32) -> (i32, i32) {
    %c0_i32 = arith.constant 0 : i32
    %c0_i32_0 = arith.constant 0 : i32
    %c0_i32_1 = arith.constant 0 : i32
    return %c0_i32, %c0_i32_0 : i32, i32
  }
  func.func @transform_3(%arg0: i32, %arg1: i32) -> (i32, i32, i32, i32) {
    %c0_i32 = arith.constant 0 : i32
    %c0_i32_0 = arith.constant 0 : i32
    %c0_i32_1 = arith.constant 0 : i32
    return %arg0, %arg1, %c0_i32, %c0_i32_0 : i32, i32, i32, i32
  }
}

</mosaic_0001>

<llo_original>
// kernel: tpu_custom_call.1
$region0: #{tpu_custom_call.1}
  #allocation0 [shape = 'u32[]', space=smem, size = 0x4, offset = 0x4, fixed_abs, tag = 'smem constant byte address 0x4 - core index']
  #allocation1 [shape = 'u32[144,128]{1,0:T(1,128)}', space=vmem, size = 0x12000, scoped, tag = 'internal scratch']
  %s0 = inlined_call_operand.vmem [shape: s32[1,4,128,1], index: 0, kind: input, shape index: {}]
  %s1 = inlined_call_operand.vmem [shape: f32[128,128], index: 1, kind: input, shape index: {}]
  %s2 = inlined_call_operand.vmem [shape: bf16[64,128], index: 2, kind: input, shape index: {}]
  %s3 = inlined_call_operand.hbm [shape: f32[128,4,1,128], index: 3, kind: output, shape index: {}]
  %s4 = sld [smem:[#allocation0]]
  $region45: #{tpu_custom_call.1} parent=0
    _
  %s6 = ssub.s32 1, %s4
  %s7 = scalar_select 0, %s6, %s4
  $region1: #{tpu_custom_call.1} parent=0
    #allocation2 [shape = 'u8[131072]{0}', space=vmem, size = 0x20000, scoped, tag = 'output window, operand 0']
    #allocation3 [shape = 's32[2]{0}', space=sflag, size = 0x8, scoped, tag = 'scoped memory for tpu_custom_call.1']
    %8 = vsyncpa [#allocation3], 0
    %s9 = scalar_lea.sflag [#allocation3], 1
    %10 = vsyncpa %s9, 0
    loop: start=0, step=1, limit=6
    $region2: #{tpu_custom_call.1} parent=1 // loop_pre_header
      _
    $region3: #{tpu_custom_call.1} parent=1 // loop_header
      %s12 = sphi 0, %s16
      %p13 = scmp.ge.s32.totalorder %s12, 6
      %s19 = sphi 0, %s31
      %s20 = sphi 0, %s27
      %s21 = sphi 0, %s19
      %s22 = sphi 0, %s20
      %s23 = sphi 0, %s21
      %s24 = sphi 0, %s22
      %s36 = sphi 0, %s38
      %s39 = sphi 0, %s36
      %s40 = sphi 0, %s39
      %s56 = sphi 0, %s40
      %s62 = sphi 0, %s64
      %s65 = sphi 0, %s62
      %s66 = sphi 0, %s65
      %s82 = sphi 0, %s66
      %s86 = sphi 0, %s86
      %s88 = sphi 0, %s86
      %s89 = sphi 0, %s88
      %s103 = sphi 0, %s89
      %s111 = sphi 0, %s113
      %s114 = sphi 0, %s111
      %s115 = sphi 0, %s114
      %s131 = sphi 0, %s115
    $region4: #{tpu_custom_call.1} parent=1 // loop_header_branch
      %15 = sbr.rel (%p13) target = $region8
    $region5: #{tpu_custom_call.1} parent=1 // loop_body
      %s17 = ssub.s32 %s12, 1
      %s18 = ssub.s32 %s12, 2
      %s25 = sadd.s32 1, %s20
      %p26 = scmp.ge.s32.totalorder %s25, 4
      %s27 = scalar_select %p26, 0, %s25
      %s28 = sadd.s32 1, %s19
      %s29 = scalar_select %p26, %s28, %s19
      %p30 = scmp.ge.s32.totalorder %s29, 1
      %s31 = scalar_select %p30, 0, %s29
      %s32 = ssub.s32 %s19, %s31
      %s33 = ssub.s32 %s20, %s27
      %s34 = sor.u32 %s32, %s33
      %p35 = scmp.eq.s32.totalorder %s34, 0
      %s37 = sadd.s32 %s36, 1
      %s38 = scalar_select %p35, %s36, %s37
      %p41 = pneg %p35
      %p42 = scmp.eq.s32.totalorder %s12, 3
      %p43 = por %p41, %p42
      %p44 = scmp.ne.s32.totalorder %s36, %s39
      %p45 = scmp.eq.s32.totalorder %s12, 0
      %p46 = por %p44, %p45
      %p47 = scmp.ne.s32.totalorder %s36, %s39
      %p48 = scmp.eq.s32.totalorder %s17, 3
      %p49 = por %p47, %p48
      %p50 = scmp.ne.s32.totalorder %s39, %s40
      %p51 = scmp.eq.s32.totalorder %s17, 0
      %p52 = por %p50, %p51
      %p53 = scmp.ne.s32.totalorder %s39, %s40
      %p54 = scmp.eq.s32.totalorder %s18, 3
      %p55 = por %p53, %p54
      %p57 = scmp.ne.s32.totalorder %s40, %s56
      %p58 = scmp.eq.s32.totalorder %s18, 0
      %p59 = por %p57, %p58
      %s60 = ssub.s32 %s19, %s31
      %p61 = scmp.eq.s32.totalorder %s60, 0
      %s63 = sadd.s32 %s62, 1
      %s64 = scalar_select %p61, %s62, %s63
      %p67 = pneg %p61
      %p68 = scmp.eq.s32.totalorder %s12, 3
      %p69 = por %p67, %p68
      %p70 = scmp.ne.s32.totalorder %s62, %s65
      %p71 = scmp.eq.s32.totalorder %s12, 0
      %p72 = por %p70, %p71
      %p73 = scmp.ne.s32.totalorder %s62, %s65
      %p74 = scmp.eq.s32.totalorder %s17, 3
      %p75 = por %p73, %p74
      %p76 = scmp.ne.s32.totalorder %s65, %s66
      %p77 = scmp.eq.s32.totalorder %s17, 0
      %p78 = por %p76, %p77
      %p79 = scmp.ne.s32.totalorder %s65, %s66
      %p80 = scmp.eq.s32.totalorder %s18, 3
      %p81 = por %p79, %p80
      %p83 = scmp.ne.s32.totalorder %s66, %s82
      %p84 = scmp.eq.s32.totalorder %s18, 0
      %p85 = por %p83, %p84
      %s87 = sadd.s32 %s86, 1
      %p90 = scmp.eq.s32.totalorder %s12, 3
      %p91 = scmp.ne.s32.totalorder %s86, %s88
      %p92 = scmp.eq.s32.totalorder %s12, 0
      %p93 = por %p91, %p92
      %p94 = scmp.ne.s32.totalorder %s86, %s88
      %p95 = scmp.eq.s32.totalorder %s17, 3
      %p96 = por %p94, %p95
      %p97 = scmp.ne.s32.totalorder %s88, %s89
      %p98 = scmp.eq.s32.totalorder %s17, 0
      %p99 = por %p97, %p98
      %p100 = scmp.ne.s32.totalorder %s88, %s89
      %p101 = scmp.eq.s32.totalorder %s18, 3
      %p102 = por %p100, %p101
      %p104 = scmp.ne.s32.totalorder %s89, %s103
      %p105 = scmp.eq.s32.totalorder %s18, 0
      %p106 = por %p104, %p105
      %s107 = ssub.s32 %s19, %s31
      %s108 = ssub.s32 %s20, %s27
      %s109 = sor.u32 %s107, %s108
      %p110 = scmp.eq.s32.totalorder %s109, 0
      %s112 = sadd.s32 %s111, 1
      %s113 = scalar_select %p110, %s111, %s112
      %p116 = pneg %p110
      %p117 = scmp.eq.s32.totalorder %s12, 3
      %p118 = por %p116, %p117
      %p119 = scmp.ne.s32.totalorder %s111, %s114
      %p120 = scmp.eq.s32.totalorder %s12, 0
      %p121 = por %p119, %p120
      %p122 = scmp.ne.s32.totalorder %s111, %s114
      %p123 = scmp.eq.s32.totalorder %s17, 3
      %p124 = por %p122, %p123
      %p125 = scmp.ne.s32.totalorder %s114, %s115
      %p126 = scmp.eq.s32.totalorder %s17, 0
      %p127 = por %p125, %p126
      %p128 = scmp.ne.s32.totalorder %s114, %s115
      %p129 = scmp.eq.s32.totalorder %s18, 3
      %p130 = por %p128, %p129
      %p132 = scmp.ne.s32.totalorder %s115, %s131
      %p133 = scmp.eq.s32.totalorder %s18, 0
      %p134 = por %p132, %p133
      %p135 = scmp.le.s32.totalorder 1, %s12
      %p136 = scmp.lt.s32.totalorder %s12, 5
      %p137 = pnand %p135, %p136
      %p138 = pneg %p137
      // Predicated region
      $region9: #{tpu_custom_call.1} parent=5 // pred_check
        _
      $region10: #{tpu_custom_call.1} parent=5 // pred_check_branch
        %140 = sbr.rel (%p137) target = $region12
      $region11: #{tpu_custom_call.1} parent=5 // pred_region
        %s141 = ssub.s32 %s12, 1
        // Predicated region
        $region13: #{tpu_custom_call.1} parent=11 // pred_check
          %p142 = pneg %p78
        $region14: #{tpu_custom_call.1} parent=11 // pred_check_branch
          %144 = sbr.rel (%p142) target = $region16
        $region15: #{tpu_custom_call.1} parent=11 // pred_region
          %s145 = smul.u32 16, %s21
          %p146 = scmp.lt.s32.totalorder %s145, 15
          %s147 = scalar_select %p146, %s145, 15
          %s148 = smul.addr %s147, 8
          %s149 = scalar_lea.vmem %s1, %s148
          %s150 = smul.u32 16, %s21
        $region16: #{tpu_custom_call.1} parent=11 // pred_fallthru
          _
        // Predicated region
        $region17: #{tpu_custom_call.1} parent=11 // pred_check
          %p151 = pneg %p99
        $region18: #{tpu_custom_call.1} parent=11 // pred_check_branch
          %153 = sbr.rel (%p151) target = $region20
        $region19: #{tpu_custom_call.1} parent=11 // pred_region
          _
        $region20: #{tpu_custom_call.1} parent=11 // pred_fallthru
          _
      $region12: #{tpu_custom_call.1} parent=5 // pred_fallthru
        _
      %p154 = scmp.lt.s32.totalorder %s12, 4
      // Predicated region
      $region21: #{tpu_custom_call.1} parent=5 // pred_check
        %p155 = pneg %p154
      $region22: #{tpu_custom_call.1} parent=5 // pred_check_branch
        %157 = sbr.rel (%p155) target = $region24
      $region23: #{tpu_custom_call.1} parent=5 // pred_region
        // Predicated region
        $region25: #{tpu_custom_call.1} parent=23 // pred_check
          %p158 = pneg %p46
        $region26: #{tpu_custom_call.1} parent=23 // pred_check_branch
          %160 = sbr.rel (%p158) target = $region28
        $region27: #{tpu_custom_call.1} parent=23 // pred_region
          %p161 = scmp.lt.s32.totalorder %s19, 0
          %s162 = scalar_select %p161, %s19, 0
          %p163 = scmp.lt.s32.totalorder %s20, 3
          %s164 = scalar_select %p163, %s20, 3
          %s165 = smul.addr %s164, 16
          %s166 = smul.addr %s162, 64
          %s167 = sadd.s32 %s165, %s166
          %s168 = smul.addr %s167, 8
          %s169 = scalar_lea.vmem %s0, %s168
        $region28: #{tpu_custom_call.1} parent=23 // pred_fallthru
          _
      $region24: #{tpu_custom_call.1} parent=5 // pred_fallthru
        _
      %p170 = scmp.le.s32.totalorder 1, %s12
      %p171 = scmp.lt.s32.totalorder %s12, 5
      %p172 = pnand %p170, %p171
      %p173 = pneg %p172
      // Predicated region
      $region29: #{tpu_custom_call.1} parent=5 // pred_check
        _
      $region30: #{tpu_custom_call.1} parent=5 // pred_check_branch
        %175 = sbr.rel (%p172) target = $region32
      $region31: #{tpu_custom_call.1} parent=5 // pred_region
        %s176 = ssub.s32 %s12, 1
        %p177 = scmp.lt.s32.totalorder %s21, 0
        %s178 = scalar_select %p177, %s21, 0
        %p179 = scmp.lt.s32.totalorder %s22, 3
        %s180 = scalar_select %p179, %s22, 3
        %s181 = smul.addr %s180, 16
        %s182 = smul.addr %s178, 64
        %s183 = sadd.s32 %s181, %s182
        %s184 = smul.addr %s183, 8
        %s185 = scalar_lea.vmem %s0, %s184
        %p186 = pneg %p52
        %p187 = pneg %p49
        %s188 = smul.u32 16, %s21
        %p189 = scmp.lt.s32.totalorder %s188, 15
        %s190 = scalar_select %p189, %s188, 15
        %s191 = smul.addr %s190, 8
        %s192 = scalar_lea.vmem %s1, %s191
        %p193 = pneg %p78
        %p194 = pneg %p75
        %p195 = pneg %p99
        %p196 = pneg %p96
        %p197 = pneg %p127
        %p198 = pneg %p124
        %s199 = sand.u32 %s114, 1
        %s200 = scalar_lea.sflag [#allocation3], %s199
        %s201 = sand.u32 %s114, 1
        %s202 = smul.addr %s201, 128
        %s203 = scalar_lea.vmem [#allocation2], %s202
        %p204 = scmp.lt.s32.totalorder %s21, 0
        %s205 = scalar_select %p204, %s21, 0
        %p206 = scmp.lt.s32.totalorder %s22, 3
        %s207 = scalar_select %p206, %s22, 3
        %s208 = smul.addr %s207, 16
        %s209 = smul.addr %s205, 64
        %s210 = sadd.s32 %s208, %s209
        %s211 = smul.addr %s210, 8
        %s212 = scalar_lea.vmem %s0, %s211
        %s213 = smul.u32 16, %s21
        %p214 = scmp.lt.s32.totalorder %s213, 15
        %s215 = scalar_select %p214, %s213, 15
        %s216 = smul.addr %s215, 8
        %s217 = scalar_lea.vmem %s1, %s216
        %s218 = smul.u32 16, %s21
        %s219 = smul.u32 128, %s21
        %v221 = vld [vmem:[%s212] sm:$0xff]
        %v222 = vld [vmem:[%s212 + $0x8] sm:$0xff]
        %v223 = vld [vmem:[%s212 + $0x10] sm:$0xff]
        %v224 = vld [vmem:[%s212 + $0x18] sm:$0xff]
        %v225 = vld [vmem:[%s212 + $0x20] sm:$0xff]
        %v226 = vld [vmem:[%s212 + $0x28] sm:$0xff]
        %v227 = vld [vmem:[%s212 + $0x30] sm:$0xff]
        %v228 = vld [vmem:[%s212 + $0x38] sm:$0xff]
        %v229 = vld [vmem:[%s212 + $0x40] sm:$0xff]
        %v230 = vld [vmem:[%s212 + $0x48] sm:$0xff]
        %v231 = vld [vmem:[%s212 + $0x50] sm:$0xff]
        %v232 = vld [vmem:[%s212 + $0x58] sm:$0xff]
        %v233 = vld [vmem:[%s212 + $0x60] sm:$0xff]
        %v234 = vld [vmem:[%s212 + $0x68] sm:$0xff]
        %v235 = vld [vmem:[%s212 + $0x70] sm:$0xff]
        %v236 = vld [vmem:[%s212 + $0x78] sm:$0xff]
        %v237 = vlaneseq
        %v238 = vand.u32 %v237, 127
        %239 = vset.pattern.permute.xlu0 0
        %240 = vperm.xlu0 %239, %v221
        %v241 = vpop.permute.xlu0 %240
        %242 = vset.pattern.permute.xlu0 0
        %243 = vperm.xlu0 %242, %v222
        %v244 = vpop.permute.xlu0 %243
        %245 = vset.pattern.permute.xlu0 0
        %246 = vperm.xlu0 %245, %v223
        %v247 = vpop.permute.xlu0 %246
        %248 = vset.pattern.permute.xlu0 0
        %249 = vperm.xlu0 %248, %v224
        %v250 = vpop.permute.xlu0 %249
        %251 = vset.pattern.permute.xlu0 0
        %252 = vperm.xlu0 %251, %v225
        %v253 = vpop.permute.xlu0 %252
        %254 = vset.pattern.permute.xlu0 0
        %255 = vperm.xlu0 %254, %v226
        %v256 = vpop.permute.xlu0 %255
        %257 = vset.pattern.permute.xlu0 0
        %258 = vperm.xlu0 %257, %v227
        %v259 = vpop.permute.xlu0 %258
        %260 = vset.pattern.permute.xlu0 0
        %261 = vperm.xlu0 %260, %v228
        %v262 = vpop.permute.xlu0 %261
        %263 = vset.pattern.permute.xlu0 0
        %264 = vperm.xlu0 %263, %v229
        %v265 = vpop.permute.xlu0 %264
        %266 = vset.pattern.permute.xlu0 0
        %267 = vperm.xlu0 %266, %v230
        %v268 = vpop.permute.xlu0 %267
        %269 = vset.pattern.permute.xlu0 0
        %270 = vperm.xlu0 %269, %v231
        %v271 = vpop.permute.xlu0 %270
        %272 = vset.pattern.permute.xlu0 0
        %273 = vperm.xlu0 %272, %v232
        %v274 = vpop.permute.xlu0 %273
        %275 = vset.pattern.permute.xlu0 0
        %276 = vperm.xlu0 %275, %v233
        %v277 = vpop.permute.xlu0 %276
        %278 = vset.pattern.permute.xlu0 0
        %279 = vperm.xlu0 %278, %v234
        %v280 = vpop.permute.xlu0 %279
        %281 = vset.pattern.permute.xlu0 0
        %282 = vperm.xlu0 %281, %v235
        %v283 = vpop.permute.xlu0 %282
        %284 = vset.pattern.permute.xlu0 0
        %285 = vperm.xlu0 %284, %v236
        %v286 = vpop.permute.xlu0 %285
        %vm287 = vcmp.eq.s32.totalorder %v241, %v238
        %vm288 = vcmp.eq.s32.totalorder %v244, %v238
        %vm289 = vcmp.eq.s32.totalorder %v247, %v238
        %vm290 = vcmp.eq.s32.totalorder %v250, %v238
        %vm291 = vcmp.eq.s32.totalorder %v253, %v238
        %vm292 = vcmp.eq.s32.totalorder %v256, %v238
        %vm293 = vcmp.eq.s32.totalorder %v259, %v238
        %vm294 = vcmp.eq.s32.totalorder %v262, %v238
        %vm295 = vcmp.eq.s32.totalorder %v265, %v238
        %vm296 = vcmp.eq.s32.totalorder %v268, %v238
        %vm297 = vcmp.eq.s32.totalorder %v271, %v238
        %vm298 = vcmp.eq.s32.totalorder %v274, %v238
        %vm299 = vcmp.eq.s32.totalorder %v277, %v238
        %vm300 = vcmp.eq.s32.totalorder %v280, %v238
        %vm301 = vcmp.eq.s32.totalorder %v283, %v238
        %vm302 = vcmp.eq.s32.totalorder %v286, %v238
        %v303 = vsel %vm287, 1, 0
        %v304 = vsel %vm288, 1, 0
        %v305 = vsel %vm289, 1, 0
        %v306 = vsel %vm290, 1, 0
        %v307 = vsel %vm291, 1, 0
        %v308 = vsel %vm292, 1, 0
        %v309 = vsel %vm293, 1, 0
        %v310 = vsel %vm294, 1, 0
        %v311 = vsel %vm295, 1, 0
        %v312 = vsel %vm296, 1, 0
        %v313 = vsel %vm297, 1, 0
        %v314 = vsel %vm298, 1, 0
        %v315 = vsel %vm299, 1, 0
        %v316 = vsel %vm300, 1, 0
        %v317 = vsel %vm301, 1, 0
        %v318 = vsel %vm302, 1, 0
        %v319 = vcvt.s32.f32 %v303
        %v320 = vcvt.s32.f32 %v304
        %v321 = vcvt.s32.f32 %v305
        %v322 = vcvt.s32.f32 %v306
        %v323 = vcvt.s32.f32 %v307
        %v324 = vcvt.s32.f32 %v308
        %v325 = vcvt.s32.f32 %v309
        %v326 = vcvt.s32.f32 %v310
        %v327 = vcvt.s32.f32 %v311
        %v328 = vcvt.s32.f32 %v312
        %v329 = vcvt.s32.f32 %v313
        %v330 = vcvt.s32.f32 %v314
        %v331 = vcvt.s32.f32 %v315
        %v332 = vcvt.s32.f32 %v316
        %v333 = vcvt.s32.f32 %v317
        %v334 = vcvt.s32.f32 %v318
        %v335 = vpack.c.bf16 %v320, %v319
        %v336 = vpack.c.bf16 %v322, %v321
        %v337 = vpack.c.bf16 %v324, %v323
        %v338 = vpack.c.bf16 %v326, %v325
        %v339 = vpack.c.bf16 %v328, %v327
        %v340 = vpack.c.bf16 %v330, %v329
        %v341 = vpack.c.bf16 %v332, %v331
        %v342 = vpack.c.bf16 %v334, %v333
        %v343 = vld [vmem:[%s2] sm:$0xf]
        %v344 = vld [vmem:[%s2 + $0x4] sm:$0xf]
        %v345 = vld [vmem:[%s2 + $0x8] sm:$0xf]
        %v346 = vld [vmem:[%s2 + $0xc] sm:$0xf]
        %v347 = vld [vmem:[%s2 + $0x10] sm:$0xf]
        %v348 = vld [vmem:[%s2 + $0x14] sm:$0xf]
        %v349 = vld [vmem:[%s2 + $0x18] sm:$0xf]
        %v350 = vld [vmem:[%s2 + $0x1c] sm:$0xf]
        %v351 = vld [vmem:[%s217] sm:$0xff]
        %v352 = vld [vmem:[%s217 + $0x8] sm:$0xff]
        %v353 = vld [vmem:[%s217 + $0x10] sm:$0xff]
        %v354 = vld [vmem:[%s217 + $0x18] sm:$0xff]
        %v355 = vld [vmem:[%s217 + $0x20] sm:$0xff]
        %v356 = vld [vmem:[%s217 + $0x28] sm:$0xff]
        %v357 = vld [vmem:[%s217 + $0x30] sm:$0xff]
        %v358 = vld [vmem:[%s217 + $0x38] sm:$0xff]
        %v359 = vld [vmem:[%s217 + $0x40] sm:$0xff]
        %v360 = vld [vmem:[%s217 + $0x48] sm:$0xff]
        %v361 = vld [vmem:[%s217 + $0x50] sm:$0xff]
        %v362 = vld [vmem:[%s217 + $0x58] sm:$0xff]
        %v363 = vld [vmem:[%s217 + $0x60] sm:$0xff]
        %v364 = vld [vmem:[%s217 + $0x68] sm:$0xff]
        %v365 = vld [vmem:[%s217 + $0x70] sm:$0xff]
        %v366 = vld [vmem:[%s217 + $0x78] sm:$0xff]
        %v375 = vunpack.c.l.b16 %v343
        %v376 = vunpack.c.l.b16 %v344
        %v377 = vunpack.c.l.b16 %v345
        %v378 = vunpack.c.l.b16 %v346
        %v379 = vunpack.c.l.b16 %v347
        %v380 = vunpack.c.l.b16 %v348
        %v381 = vunpack.c.l.b16 %v349
        %v382 = vunpack.c.l.b16 %v350
        %v383 = vpack.c.b16 %v376, %v375
        %v384 = vpack.c.b16 %v378, %v377
        %v385 = vpack.c.b16 %v380, %v379
        %v386 = vpack.c.b16 %v382, %v381
        %vm391 = vcmask 523264
        %v393 = vsel %vm391, %v335, 0
        %v396 = vsel %vm391, %v336, 0
        %v399 = vsel %vm391, %v337, 0
        %v402 = vsel %vm391, %v338, 0
        %v405 = vsel %vm391, %v339, 0
        %v408 = vsel %vm391, %v340, 0
        %v411 = vsel %vm391, %v341, 0
        %v414 = vsel %vm391, %v342, 0
        %416 = vmatprep.subr.bf16.mxu0 0
        %417 = vmatpush1.bf16.msra.mxu0 %v383
        %418 = vmatprep.subr.bf16.mxu0 0
        %419 = vmatpush1.bf16.msra.mxu0 %v384
        %420 = vmatprep.subr.bf16.mxu0 0
        %421 = vmatpush1.bf16.msra.mxu0 %v385
        %422 = vmatprep.subr.bf16.mxu0 0
        %423 = vmatpush1.bf16.msra.mxu0 %v386
        %424 = vmatprep.subr.bf16.mxu0 0
        %425 = vmatpush1.bf16.msra.mxu0 0
        %426 = vmatprep.subr.bf16.mxu0 0
        %427 = vmatpush1.bf16.msra.mxu0 0
        %428 = vmatprep.subr.bf16.mxu0 0
        %429 = vmatpush1.bf16.msra.mxu0 0
        %430 = vmatprep.subr.bf16.mxu0 0
        %431 = vmatpush1.bf16.msra.mxu0 0
        %432 = vmatprep.subr.bf16.mxu0 0
        %433 = vmatpush1.bf16.msra.mxu0 0
        %434 = vmatprep.subr.bf16.mxu0 0
        %435 = vmatpush1.bf16.msra.mxu0 0
        %436 = vmatprep.subr.bf16.mxu0 0
        %437 = vmatpush1.bf16.msra.mxu0 0
        %438 = vmatprep.subr.bf16.mxu0 0
        %439 = vmatpush1.bf16.msra.mxu0 0
        %440 = vmatprep.subr.bf16.mxu0 0
        %441 = vmatpush1.bf16.msra.mxu0 0
        %442 = vmatprep.subr.bf16.mxu0 0
        %443 = vmatpush1.bf16.msra.mxu0 0
        %444 = vmatprep.subr.bf16.mxu0 0
        %445 = vmatpush1.bf16.msra.mxu0 0
        %446 = vmatprep.subr.bf16.mxu0 0
        %447 = vmatpush1.bf16.msra.mxu0 0
        %448 = vmatprep.mubr.bf16.mxu0 0
        %449 = vmatmul.mubr.bf16.gmra.mrb[0].mxu0 %v393
        %v450 = vpop.f32.mrb[0].mxu0
        %v451 = vadd.f32 %v351, %v450
        %v452 = vpop.f32.mrb[0].mxu0
        %v453 = vpop.f32.mrb[0].mxu0
        %v454 = vadd.f32 %v352, %v453
        %v455 = vpop.f32.mrb[0].mxu0
        %456 = vmatprep.mubr.bf16.mxu0 0
        %457 = vmatmul.mubr.bf16.gmra.mrb[0].mxu0 %v396
        %v458 = vpop.f32.mrb[0].mxu0
        %v459 = vadd.f32 %v353, %v458
        %v460 = vpop.f32.mrb[0].mxu0
        %v461 = vpop.f32.mrb[0].mxu0
        %v462 = vadd.f32 %v354, %v461
        %v463 = vpop.f32.mrb[0].mxu0
        %464 = vmatprep.mubr.bf16.mxu0 0
        %465 = vmatmul.mubr.bf16.gmra.mrb[0].mxu0 %v399
        %v466 = vpop.f32.mrb[0].mxu0
        %v467 = vadd.f32 %v355, %v466
        %v468 = vpop.f32.mrb[0].mxu0
        %v469 = vpop.f32.mrb[0].mxu0
        %v470 = vadd.f32 %v356, %v469
        %v471 = vpop.f32.mrb[0].mxu0
        %472 = vmatprep.mubr.bf16.mxu0 0
        %473 = vmatmul.mubr.bf16.gmra.mrb[0].mxu0 %v402
        %v474 = vpop.f32.mrb[0].mxu0
        %v475 = vadd.f32 %v357, %v474
        %v476 = vpop.f32.mrb[0].mxu0
        %v477 = vpop.f32.mrb[0].mxu0
        %v478 = vadd.f32 %v358, %v477
        %v479 = vpop.f32.mrb[0].mxu0
        %480 = vmatprep.mubr.bf16.mxu0 0
        %481 = vmatmul.mubr.bf16.gmra.mrb[0].mxu0 %v405
        %v482 = vpop.f32.mrb[0].mxu0
        %v483 = vadd.f32 %v359, %v482
        %v484 = vpop.f32.mrb[0].mxu0
        %v485 = vpop.f32.mrb[0].mxu0
        %v486 = vadd.f32 %v360, %v485
        %v487 = vpop.f32.mrb[0].mxu0
        %488 = vmatprep.mubr.bf16.mxu0 0
        %489 = vmatmul.mubr.bf16.gmra.mrb[0].mxu0 %v408
        %v490 = vpop.f32.mrb[0].mxu0
        %v491 = vadd.f32 %v361, %v490
        %v492 = vpop.f32.mrb[0].mxu0
        %v493 = vpop.f32.mrb[0].mxu0
        %v494 = vadd.f32 %v362, %v493
        %v495 = vpop.f32.mrb[0].mxu0
        %496 = vmatprep.mubr.bf16.mxu0 0
        %497 = vmatmul.mubr.bf16.gmra.mrb[0].mxu0 %v411
        %v498 = vpop.f32.mrb[0].mxu0
        %v499 = vadd.f32 %v363, %v498
        %v500 = vpop.f32.mrb[0].mxu0
        %v501 = vpop.f32.mrb[0].mxu0
        %v502 = vadd.f32 %v364, %v501
        %v503 = vpop.f32.mrb[0].mxu0
        %504 = vmatprep.mubr.bf16.mxu0 0
        %505 = vmatmul.mubr.bf16.gmra.mrb[0].mxu0 %v414
        %v506 = vpop.f32.mrb[0].mxu0
        %v507 = vadd.f32 %v365, %v506
        %v508 = vpop.f32.mrb[0].mxu0
        %v509 = vpop.f32.mrb[0].mxu0
        %v510 = vadd.f32 %v366, %v509
        %v511 = vpop.f32.mrb[0].mxu0
        %512 = vdwg.mxu0
        %v529 = vcombine.high %v451, %v451
        %v531 = vunpack.c.l.s4 1966171168
        %v532 = vunpack.c.0.s8 %v531
        %v533 = vlaneseq
        %v534 = vshrl.u32 %v533, 7
        %v535 = vsub.s32 %v532, %v534
        %v536 = vrot.slane %v451, %v535
        %v538 = vunpack.c.l.s4 1966171168
        %v539 = vunpack.c.0.s8 %v538
        %v540 = vlaneseq
        %v541 = vshrl.u32 %v540, 7
        %v542 = vsub.s32 %v539, %v541
        %v543 = vrot.slane %v529, %v542
        %v544 = vcombine.high %v536, %v536
        %v545 = vcombine.high %v543, %v543
        %v547 = vunpack.c.l.s4 1966171168
        %v548 = vunpack.c.0.s8 %v547
        %v549 = vlaneseq
        %v550 = vshrl.u32 %v549, 7
        %v551 = vsub.s32 %v548, %v550
        %v552 = vrot.slane %v536, %v551
        %v554 = vunpack.c.l.s4 1966171168
        %v555 = vunpack.c.0.s8 %v554
        %v556 = vlaneseq
        %v557 = vshrl.u32 %v556, 7
        %v558 = vsub.s32 %v555, %v557
        %v559 = vrot.slane %v543, %v558
        %v561 = vunpack.c.l.s4 1966171168
        %v562 = vunpack.c.0.s8 %v561
        %v563 = vlaneseq
        %v564 = vshrl.u32 %v563, 7
        %v565 = vsub.s32 %v562, %v564
        %v566 = vrot.slane %v544, %v565
        %v568 = vunpack.c.l.s4 1966171168
        %v569 = vunpack.c.0.s8 %v568
        %v570 = vlaneseq
        %v571 = vshrl.u32 %v570, 7
        %v572 = vsub.s32 %v569, %v571
        %v573 = vrot.slane %v545, %v572
        %v574 = vcombine.high %v552, %v552
        %v575 = vcombine.high %v559, %v559
        %v576 = vcombine.high %v566, %v566
        %v577 = vcombine.high %v573, %v573
        %v578 = vcombine.high %v454, %v454
        %v580 = vunpack.c.l.s4 1966171168
        %v581 = vunpack.c.0.s8 %v580
        %v582 = vlaneseq
        %v583 = vshrl.u32 %v582, 7
        %v584 = vsub.s32 %v581, %v583
        %v585 = vrot.slane %v454, %v584
        %v587 = vunpack.c.l.s4 1966171168
        %v588 = vunpack.c.0.s8 %v587
        %v589 = vlaneseq
        %v590 = vshrl.u32 %v589, 7
        %v591 = vsub.s32 %v588, %v590
        %v592 = vrot.slane %v578, %v591
        %v593 = vcombine.high %v585, %v585
        %v594 = vcombine.high %v592, %v592
        %v596 = vunpack.c.l.s4 1966171168
        %v597 = vunpack.c.0.s8 %v596
        %v598 = vlaneseq
        %v599 = vshrl.u32 %v598, 7
        %v600 = vsub.s32 %v597, %v599
        %v601 = vrot.slane %v585, %v600
        %v603 = vunpack.c.l.s4 1966171168
        %v604 = vunpack.c.0.s8 %v603
        %v605 = vlaneseq
        %v606 = vshrl.u32 %v605, 7
        %v607 = vsub.s32 %v604, %v606
        %v608 = vrot.slane %v592, %v607
        %v610 = vunpack.c.l.s4 1966171168
        %v611 = vunpack.c.0.s8 %v610
        %v612 = vlaneseq
        %v613 = vshrl.u32 %v612, 7
        %v614 = vsub.s32 %v611, %v613
        %v615 = vrot.slane %v593, %v614
        %v617 = vunpack.c.l.s4 1966171168
        %v618 = vunpack.c.0.s8 %v617
        %v619 = vlaneseq
        %v620 = vshrl.u32 %v619, 7
        %v621 = vsub.s32 %v618, %v620
        %v622 = vrot.slane %v594, %v621
        %v623 = vcombine.high %v601, %v601
        %v624 = vcombine.high %v608, %v608
        %v625 = vcombine.high %v615, %v615
        %v626 = vcombine.high %v622, %v622
        %v627 = vcombine.high %v459, %v459
        %v629 = vunpack.c.l.s4 1966171168
        %v630 = vunpack.c.0.s8 %v629
        %v631 = vlaneseq
        %v632 = vshrl.u32 %v631, 7
        %v633 = vsub.s32 %v630, %v632
        %v634 = vrot.slane %v459, %v633
        %v636 = vunpack.c.l.s4 1966171168
        %v637 = vunpack.c.0.s8 %v636
        %v638 = vlaneseq
        %v639 = vshrl.u32 %v638, 7
        %v640 = vsub.s32 %v637, %v639
        %v641 = vrot.slane %v627, %v640
        %v642 = vcombine.high %v634, %v634
        %v643 = vcombine.high %v641, %v641
        %v645 = vunpack.c.l.s4 1966171168
        %v646 = vunpack.c.0.s8 %v645
        %v647 = vlaneseq
        %v648 = vshrl.u32 %v647, 7
        %v649 = vsub.s32 %v646, %v648
        %v650 = vrot.slane %v634, %v649
        %v652 = vunpack.c.l.s4 1966171168
        %v653 = vunpack.c.0.s8 %v652
        %v654 = vlaneseq
        %v655 = vshrl.u32 %v654, 7
        %v656 = vsub.s32 %v653, %v655
        %v657 = vrot.slane %v641, %v656
        %v659 = vunpack.c.l.s4 1966171168
        %v660 = vunpack.c.0.s8 %v659
        %v661 = vlaneseq
        %v662 = vshrl.u32 %v661, 7
        %v663 = vsub.s32 %v660, %v662
        %v664 = vrot.slane %v642, %v663
        %v666 = vunpack.c.l.s4 1966171168
        %v667 = vunpack.c.0.s8 %v666
        %v668 = vlaneseq
        %v669 = vshrl.u32 %v668, 7
        %v670 = vsub.s32 %v667, %v669
        %v671 = vrot.slane %v643, %v670
        %v672 = vcombine.high %v650, %v650
        %v673 = vcombine.high %v657, %v657
        %v674 = vcombine.high %v664, %v664
        %v675 = vcombine.high %v671, %v671
        %v676 = vcombine.high %v462, %v462
        %v678 = vunpack.c.l.s4 1966171168
        %v679 = vunpack.c.0.s8 %v678
        %v680 = vlaneseq
        %v681 = vshrl.u32 %v680, 7
        %v682 = vsub.s32 %v679, %v681
        %v683 = vrot.slane %v462, %v682
        %v685 = vunpack.c.l.s4 1966171168
        %v686 = vunpack.c.0.s8 %v685
        %v687 = vlaneseq
        %v688 = vshrl.u32 %v687, 7
        %v689 = vsub.s32 %v686, %v688
        %v690 = vrot.slane %v676, %v689
        %v691 = vcombine.high %v683, %v683
        %v692 = vcombine.high %v690, %v690
        %v694 = vunpack.c.l.s4 1966171168
        %v695 = vunpack.c.0.s8 %v694
        %v696 = vlaneseq
        %v697 = vshrl.u32 %v696, 7
        %v698 = vsub.s32 %v695, %v697
        %v699 = vrot.slane %v683, %v698
        %v701 = vunpack.c.l.s4 1966171168
        %v702 = vunpack.c.0.s8 %v701
        %v703 = vlaneseq
        %v704 = vshrl.u32 %v703, 7
        %v705 = vsub.s32 %v702, %v704
        %v706 = vrot.slane %v690, %v705
        %v708 = vunpack.c.l.s4 1966171168
        %v709 = vunpack.c.0.s8 %v708
        %v710 = vlaneseq
        %v711 = vshrl.u32 %v710, 7
        %v712 = vsub.s32 %v709, %v711
        %v713 = vrot.slane %v691, %v712
        %v715 = vunpack.c.l.s4 1966171168
        %v716 = vunpack.c.0.s8 %v715
        %v717 = vlaneseq
        %v718 = vshrl.u32 %v717, 7
        %v719 = vsub.s32 %v716, %v718
        %v720 = vrot.slane %v692, %v719
        %v721 = vcombine.high %v699, %v699
        %v722 = vcombine.high %v706, %v706
        %v723 = vcombine.high %v713, %v713
        %v724 = vcombine.high %v720, %v720
        %v725 = vcombine.high %v467, %v467
        %v727 = vunpack.c.l.s4 1966171168
        %v728 = vunpack.c.0.s8 %v727
        %v729 = vlaneseq
        %v730 = vshrl.u32 %v729, 7
        %v731 = vsub.s32 %v728, %v730
        %v732 = vrot.slane %v467, %v731
        %v734 = vunpack.c.l.s4 1966171168
        %v735 = vunpack.c.0.s8 %v734
        %v736 = vlaneseq
        %v737 = vshrl.u32 %v736, 7
        %v738 = vsub.s32 %v735, %v737
        %v739 = vrot.slane %v725, %v738
        %v740 = vcombine.high %v732, %v732
        %v741 = vcombine.high %v739, %v739
        %v743 = vunpack.c.l.s4 1966171168
        %v744 = vunpack.c.0.s8 %v743
        %v745 = vlaneseq
        %v746 = vshrl.u32 %v745, 7
        %v747 = vsub.s32 %v744, %v746
        %v748 = vrot.slane %v732, %v747
        %v750 = vunpack.c.l.s4 1966171168
        %v751 = vunpack.c.0.s8 %v750
        %v752 = vlaneseq
        %v753 = vshrl.u32 %v752, 7
        %v754 = vsub.s32 %v751, %v753
        %v755 = vrot.slane %v739, %v754
        %v757 = vunpack.c.l.s4 1966171168
        %v758 = vunpack.c.0.s8 %v757
        %v759 = vlaneseq
        %v760 = vshrl.u32 %v759, 7
        %v761 = vsub.s32 %v758, %v760
        %v762 = vrot.slane %v740, %v761
        %v764 = vunpack.c.l.s4 1966171168
        %v765 = vunpack.c.0.s8 %v764
        %v766 = vlaneseq
        %v767 = vshrl.u32 %v766, 7
        %v768 = vsub.s32 %v765, %v767
        %v769 = vrot.slane %v741, %v768
        %v770 = vcombine.high %v748, %v748
        %v771 = vcombine.high %v755, %v755
        %v772 = vcombine.high %v762, %v762
        %v773 = vcombine.high %v769, %v769
        %v774 = vcombine.high %v470, %v470
        %v776 = vunpack.c.l.s4 1966171168
        %v777 = vunpack.c.0.s8 %v776
        %v778 = vlaneseq
        %v779 = vshrl.u32 %v778, 7
        %v780 = vsub.s32 %v777, %v779
        %v781 = vrot.slane %v470, %v780
        %v783 = vunpack.c.l.s4 1966171168
        %v784 = vunpack.c.0.s8 %v783
        %v785 = vlaneseq
        %v786 = vshrl.u32 %v785, 7
        %v787 = vsub.s32 %v784, %v786
        %v788 = vrot.slane %v774, %v787
        %v789 = vcombine.high %v781, %v781
        %v790 = vcombine.high %v788, %v788
        %v792 = vunpack.c.l.s4 1966171168
        %v793 = vunpack.c.0.s8 %v792
        %v794 = vlaneseq
        %v795 = vshrl.u32 %v794, 7
        %v796 = vsub.s32 %v793, %v795
        %v797 = vrot.slane %v781, %v796
        %v799 = vunpack.c.l.s4 1966171168
        %v800 = vunpack.c.0.s8 %v799
        %v801 = vlaneseq
        %v802 = vshrl.u32 %v801, 7
        %v803 = vsub.s32 %v800, %v802
        %v804 = vrot.slane %v788, %v803
        %v806 = vunpack.c.l.s4 1966171168
        %v807 = vunpack.c.0.s8 %v806
        %v808 = vlaneseq
        %v809 = vshrl.u32 %v808, 7
        %v810 = vsub.s32 %v807, %v809
        %v811 = vrot.slane %v789, %v810
        %v813 = vunpack.c.l.s4 1966171168
        %v814 = vunpack.c.0.s8 %v813
        %v815 = vlaneseq
        %v816 = vshrl.u32 %v815, 7
        %v817 = vsub.s32 %v814, %v816
        %v818 = vrot.slane %v790, %v817
        %v819 = vcombine.high %v797, %v797
        %v820 = vcombine.high %v804, %v804
        %v821 = vcombine.high %v811, %v811
        %v822 = vcombine.high %v818, %v818
        %v823 = vcombine.high %v475, %v475
        %v825 = vunpack.c.l.s4 1966171168
        %v826 = vunpack.c.0.s8 %v825
        %v827 = vlaneseq
        %v828 = vshrl.u32 %v827, 7
        %v829 = vsub.s32 %v826, %v828
        %v830 = vrot.slane %v475, %v829
        %v832 = vunpack.c.l.s4 1966171168
        %v833 = vunpack.c.0.s8 %v832
        %v834 = vlaneseq
        %v835 = vshrl.u32 %v834, 7
        %v836 = vsub.s32 %v833, %v835
        %v837 = vrot.slane %v823, %v836
        %v838 = vcombine.high %v830, %v830
        %v839 = vcombine.high %v837, %v837
        %v841 = vunpack.c.l.s4 1966171168
        %v842 = vunpack.c.0.s8 %v841
        %v843 = vlaneseq
        %v844 = vshrl.u32 %v843, 7
        %v845 = vsub.s32 %v842, %v844
        %v846 = vrot.slane %v830, %v845
        %v848 = vunpack.c.l.s4 1966171168
        %v849 = vunpack.c.0.s8 %v848
        %v850 = vlaneseq
        %v851 = vshrl.u32 %v850, 7
        %v852 = vsub.s32 %v849, %v851
        %v853 = vrot.slane %v837, %v852
        %v855 = vunpack.c.l.s4 1966171168
        %v856 = vunpack.c.0.s8 %v855
        %v857 = vlaneseq
        %v858 = vshrl.u32 %v857, 7
        %v859 = vsub.s32 %v856, %v858
        %v860 = vrot.slane %v838, %v859
        %v862 = vunpack.c.l.s4 1966171168
        %v863 = vunpack.c.0.s8 %v862
        %v864 = vlaneseq
        %v865 = vshrl.u32 %v864, 7
        %v866 = vsub.s32 %v863, %v865
        %v867 = vrot.slane %v839, %v866
        %v868 = vcombine.high %v846, %v846
        %v869 = vcombine.high %v853, %v853
        %v870 = vcombine.high %v860, %v860
        %v871 = vcombine.high %v867, %v867
        %v872 = vcombine.high %v478, %v478
        %v874 = vunpack.c.l.s4 1966171168
        %v875 = vunpack.c.0.s8 %v874
        %v876 = vlaneseq
        %v877 = vshrl.u32 %v876, 7
        %v878 = vsub.s32 %v875, %v877
        %v879 = vrot.slane %v478, %v878
        %v881 = vunpack.c.l.s4 1966171168
        %v882 = vunpack.c.0.s8 %v881
        %v883 = vlaneseq
        %v884 = vshrl.u32 %v883, 7
        %v885 = vsub.s32 %v882, %v884
        %v886 = vrot.slane %v872, %v885
        %v887 = vcombine.high %v879, %v879
        %v888 = vcombine.high %v886, %v886
        %v890 = vunpack.c.l.s4 1966171168
        %v891 = vunpack.c.0.s8 %v890
        %v892 = vlaneseq
        %v893 = vshrl.u32 %v892, 7
        %v894 = vsub.s32 %v891, %v893
        %v895 = vrot.slane %v879, %v894
        %v897 = vunpack.c.l.s4 1966171168
        %v898 = vunpack.c.0.s8 %v897
        %v899 = vlaneseq
        %v900 = vshrl.u32 %v899, 7
        %v901 = vsub.s32 %v898, %v900
        %v902 = vrot.slane %v886, %v901
        %v904 = vunpack.c.l.s4 1966171168
        %v905 = vunpack.c.0.s8 %v904
        %v906 = vlaneseq
        %v907 = vshrl.u32 %v906, 7
        %v908 = vsub.s32 %v905, %v907
        %v909 = vrot.slane %v887, %v908
        %v911 = vunpack.c.l.s4 1966171168
        %v912 = vunpack.c.0.s8 %v911
        %v913 = vlaneseq
        %v914 = vshrl.u32 %v913, 7
        %v915 = vsub.s32 %v912, %v914
        %v916 = vrot.slane %v888, %v915
        %v917 = vcombine.high %v895, %v895
        %v918 = vcombine.high %v902, %v902
        %v919 = vcombine.high %v909, %v909
        %v920 = vcombine.high %v916, %v916
        %v921 = vcombine.high %v483, %v483
        %v923 = vunpack.c.l.s4 1966171168
        %v924 = vunpack.c.0.s8 %v923
        %v925 = vlaneseq
        %v926 = vshrl.u32 %v925, 7
        %v927 = vsub.s32 %v924, %v926
        %v928 = vrot.slane %v483, %v927
        %v930 = vunpack.c.l.s4 1966171168
        %v931 = vunpack.c.0.s8 %v930
        %v932 = vlaneseq
        %v933 = vshrl.u32 %v932, 7
        %v934 = vsub.s32 %v931, %v933
        %v935 = vrot.slane %v921, %v934
        %v936 = vcombine.high %v928, %v928
        %v937 = vcombine.high %v935, %v935
        %v939 = vunpack.c.l.s4 1966171168
        %v940 = vunpack.c.0.s8 %v939
        %v941 = vlaneseq
        %v942 = vshrl.u32 %v941, 7
        %v943 = vsub.s32 %v940, %v942
        %v944 = vrot.slane %v928, %v943
        %v946 = vunpack.c.l.s4 1966171168
        %v947 = vunpack.c.0.s8 %v946
        %v948 = vlaneseq
        %v949 = vshrl.u32 %v948, 7
        %v950 = vsub.s32 %v947, %v949
        %v951 = vrot.slane %v935, %v950
        %v953 = vunpack.c.l.s4 1966171168
        %v954 = vunpack.c.0.s8 %v953
        %v955 = vlaneseq
        %v956 = vshrl.u32 %v955, 7
        %v957 = vsub.s32 %v954, %v956
        %v958 = vrot.slane %v936, %v957
        %v960 = vunpack.c.l.s4 1966171168
        %v961 = vunpack.c.0.s8 %v960
        %v962 = vlaneseq
        %v963 = vshrl.u32 %v962, 7
        %v964 = vsub.s32 %v961, %v963
        %v965 = vrot.slane %v937, %v964
        %v966 = vcombine.high %v944, %v944
        %v967 = vcombine.high %v951, %v951
        %v968 = vcombine.high %v958, %v958
        %v969 = vcombine.high %v965, %v965
        %v970 = vcombine.high %v486, %v486
        %v972 = vunpack.c.l.s4 1966171168
        %v973 = vunpack.c.0.s8 %v972
        %v974 = vlaneseq
        %v975 = vshrl.u32 %v974, 7
        %v976 = vsub.s32 %v973, %v975
        %v977 = vrot.slane %v486, %v976
        %v979 = vunpack.c.l.s4 1966171168
        %v980 = vunpack.c.0.s8 %v979
        %v981 = vlaneseq
        %v982 = vshrl.u32 %v981, 7
        %v983 = vsub.s32 %v980, %v982
        %v984 = vrot.slane %v970, %v983
        %v985 = vcombine.high %v977, %v977
        %v986 = vcombine.high %v984, %v984
        %v988 = vunpack.c.l.s4 1966171168
        %v989 = vunpack.c.0.s8 %v988
        %v990 = vlaneseq
        %v991 = vshrl.u32 %v990, 7
        %v992 = vsub.s32 %v989, %v991
        %v993 = vrot.slane %v977, %v992
        %v995 = vunpack.c.l.s4 1966171168
        %v996 = vunpack.c.0.s8 %v995
        %v997 = vlaneseq
        %v998 = vshrl.u32 %v997, 7
        %v999 = vsub.s32 %v996, %v998
        %v1000 = vrot.slane %v984, %v999
        %v1002 = vunpack.c.l.s4 1966171168
        %v1003 = vunpack.c.0.s8 %v1002
        %v1004 = vlaneseq
        %v1005 = vshrl.u32 %v1004, 7
        %v1006 = vsub.s32 %v1003, %v1005
        %v1007 = vrot.slane %v985, %v1006
        %v1009 = vunpack.c.l.s4 1966171168
        %v1010 = vunpack.c.0.s8 %v1009
        %v1011 = vlaneseq
        %v1012 = vshrl.u32 %v1011, 7
        %v1013 = vsub.s32 %v1010, %v1012
        %v1014 = vrot.slane %v986, %v1013
        %v1015 = vcombine.high %v993, %v993
        %v1016 = vcombine.high %v1000, %v1000
        %v1017 = vcombine.high %v1007, %v1007
        %v1018 = vcombine.high %v1014, %v1014
        %v1019 = vcombine.high %v491, %v491
        %v1021 = vunpack.c.l.s4 1966171168
        %v1022 = vunpack.c.0.s8 %v1021
        %v1023 = vlaneseq
        %v1024 = vshrl.u32 %v1023, 7
        %v1025 = vsub.s32 %v1022, %v1024
        %v1026 = vrot.slane %v491, %v1025
        %v1028 = vunpack.c.l.s4 1966171168
        %v1029 = vunpack.c.0.s8 %v1028
        %v1030 = vlaneseq
        %v1031 = vshrl.u32 %v1030, 7
        %v1032 = vsub.s32 %v1029, %v1031
        %v1033 = vrot.slane %v1019, %v1032
        %v1034 = vcombine.high %v1026, %v1026
        %v1035 = vcombine.high %v1033, %v1033
        %v1037 = vunpack.c.l.s4 1966171168
        %v1038 = vunpack.c.0.s8 %v1037
        %v1039 = vlaneseq
        %v1040 = vshrl.u32 %v1039, 7
        %v1041 = vsub.s32 %v1038, %v1040
        %v1042 = vrot.slane %v1026, %v1041
        %v1044 = vunpack.c.l.s4 1966171168
        %v1045 = vunpack.c.0.s8 %v1044
        %v1046 = vlaneseq
        %v1047 = vshrl.u32 %v1046, 7
        %v1048 = vsub.s32 %v1045, %v1047
        %v1049 = vrot.slane %v1033, %v1048
        %v1051 = vunpack.c.l.s4 1966171168
        %v1052 = vunpack.c.0.s8 %v1051
        %v1053 = vlaneseq
        %v1054 = vshrl.u32 %v1053, 7
        %v1055 = vsub.s32 %v1052, %v1054
        %v1056 = vrot.slane %v1034, %v1055
        %v1058 = vunpack.c.l.s4 1966171168
        %v1059 = vunpack.c.0.s8 %v1058
        %v1060 = vlaneseq
        %v1061 = vshrl.u32 %v1060, 7
        %v1062 = vsub.s32 %v1059, %v1061
        %v1063 = vrot.slane %v1035, %v1062
        %v1064 = vcombine.high %v1042, %v1042
        %v1065 = vcombine.high %v1049, %v1049
        %v1066 = vcombine.high %v1056, %v1056
        %v1067 = vcombine.high %v1063, %v1063
        %v1068 = vcombine.high %v494, %v494
        %v1070 = vunpack.c.l.s4 1966171168
        %v1071 = vunpack.c.0.s8 %v1070
        %v1072 = vlaneseq
        %v1073 = vshrl.u32 %v1072, 7
        %v1074 = vsub.s32 %v1071, %v1073
        %v1075 = vrot.slane %v494, %v1074
        %v1077 = vunpack.c.l.s4 1966171168
        %v1078 = vunpack.c.0.s8 %v1077
        %v1079 = vlaneseq
        %v1080 = vshrl.u32 %v1079, 7
        %v1081 = vsub.s32 %v1078, %v1080
        %v1082 = vrot.slane %v1068, %v1081
        %v1083 = vcombine.high %v1075, %v1075
        %v1084 = vcombine.high %v1082, %v1082
        %v1086 = vunpack.c.l.s4 1966171168
        %v1087 = vunpack.c.0.s8 %v1086
        %v1088 = vlaneseq
        %v1089 = vshrl.u32 %v1088, 7
        %v1090 = vsub.s32 %v1087, %v1089
        %v1091 = vrot.slane %v1075, %v1090
        %v1093 = vunpack.c.l.s4 1966171168
        %v1094 = vunpack.c.0.s8 %v1093
        %v1095 = vlaneseq
        %v1096 = vshrl.u32 %v1095, 7
        %v1097 = vsub.s32 %v1094, %v1096
        %v1098 = vrot.slane %v1082, %v1097
        %v1100 = vunpack.c.l.s4 1966171168
        %v1101 = vunpack.c.0.s8 %v1100
        %v1102 = vlaneseq
        %v1103 = vshrl.u32 %v1102, 7
        %v1104 = vsub.s32 %v1101, %v1103
        %v1105 = vrot.slane %v1083, %v1104
        %v1107 = vunpack.c.l.s4 1966171168
        %v1108 = vunpack.c.0.s8 %v1107
        %v1109 = vlaneseq
        %v1110 = vshrl.u32 %v1109, 7
        %v1111 = vsub.s32 %v1108, %v1110
        %v1112 = vrot.slane %v1084, %v1111
        %v1113 = vcombine.high %v1091, %v1091
        %v1114 = vcombine.high %v1098, %v1098
        %v1115 = vcombine.high %v1105, %v1105
        %v1116 = vcombine.high %v1112, %v1112
        %v1117 = vcombine.high %v499, %v499
        %v1119 = vunpack.c.l.s4 1966171168
        %v1120 = vunpack.c.0.s8 %v1119
        %v1121 = vlaneseq
        %v1122 = vshrl.u32 %v1121, 7
        %v1123 = vsub.s32 %v1120, %v1122
        %v1124 = vrot.slane %v499, %v1123
        %v1126 = vunpack.c.l.s4 1966171168
        %v1127 = vunpack.c.0.s8 %v1126
        %v1128 = vlaneseq
        %v1129 = vshrl.u32 %v1128, 7
        %v1130 = vsub.s32 %v1127, %v1129
        %v1131 = vrot.slane %v1117, %v1130
        %v1132 = vcombine.high %v1124, %v1124
        %v1133 = vcombine.high %v1131, %v1131
        %v1135 = vunpack.c.l.s4 1966171168
        %v1136 = vunpack.c.0.s8 %v1135
        %v1137 = vlaneseq
        %v1138 = vshrl.u32 %v1137, 7
        %v1139 = vsub.s32 %v1136, %v1138
        %v1140 = vrot.slane %v1124, %v1139
        %v1142 = vunpack.c.l.s4 1966171168
        %v1143 = vunpack.c.0.s8 %v1142
        %v1144 = vlaneseq
        %v1145 = vshrl.u32 %v1144, 7
        %v1146 = vsub.s32 %v1143, %v1145
        %v1147 = vrot.slane %v1131, %v1146
        %v1149 = vunpack.c.l.s4 1966171168
        %v1150 = vunpack.c.0.s8 %v1149
        %v1151 = vlaneseq
        %v1152 = vshrl.u32 %v1151, 7
        %v1153 = vsub.s32 %v1150, %v1152
        %v1154 = vrot.slane %v1132, %v1153
        %v1156 = vunpack.c.l.s4 1966171168
        %v1157 = vunpack.c.0.s8 %v1156
        %v1158 = vlaneseq
        %v1159 = vshrl.u32 %v1158, 7
        %v1160 = vsub.s32 %v1157, %v1159
        %v1161 = vrot.slane %v1133, %v1160
        %v1162 = vcombine.high %v1140, %v1140
        %v1163 = vcombine.high %v1147, %v1147
        %v1164 = vcombine.high %v1154, %v1154
        %v1165 = vcombine.high %v1161, %v1161
        %v1166 = vcombine.high %v502, %v502
        %v1168 = vunpack.c.l.s4 1966171168
        %v1169 = vunpack.c.0.s8 %v1168
        %v1170 = vlaneseq
        %v1171 = vshrl.u32 %v1170, 7
        %v1172 = vsub.s32 %v1169, %v1171
        %v1173 = vrot.slane %v502, %v1172
        %v1175 = vunpack.c.l.s4 1966171168
        %v1176 = vunpack.c.0.s8 %v1175
        %v1177 = vlaneseq
        %v1178 = vshrl.u32 %v1177, 7
        %v1179 = vsub.s32 %v1176, %v1178
        %v1180 = vrot.slane %v1166, %v1179
        %v1181 = vcombine.high %v1173, %v1173
        %v1182 = vcombine.high %v1180, %v1180
        %v1184 = vunpack.c.l.s4 1966171168
        %v1185 = vunpack.c.0.s8 %v1184
        %v1186 = vlaneseq
        %v1187 = vshrl.u32 %v1186, 7
        %v1188 = vsub.s32 %v1185, %v1187
        %v1189 = vrot.slane %v1173, %v1188
        %v1191 = vunpack.c.l.s4 1966171168
        %v1192 = vunpack.c.0.s8 %v1191
        %v1193 = vlaneseq
        %v1194 = vshrl.u32 %v1193, 7
        %v1195 = vsub.s32 %v1192, %v1194
        %v1196 = vrot.slane %v1180, %v1195
        %v1198 = vunpack.c.l.s4 1966171168
        %v1199 = vunpack.c.0.s8 %v1198
        %v1200 = vlaneseq
        %v1201 = vshrl.u32 %v1200, 7
        %v1202 = vsub.s32 %v1199, %v1201
        %v1203 = vrot.slane %v1181, %v1202
        %v1205 = vunpack.c.l.s4 1966171168
        %v1206 = vunpack.c.0.s8 %v1205
        %v1207 = vlaneseq
        %v1208 = vshrl.u32 %v1207, 7
        %v1209 = vsub.s32 %v1206, %v1208
        %v1210 = vrot.slane %v1182, %v1209
        %v1211 = vcombine.high %v1189, %v1189
        %v1212 = vcombine.high %v1196, %v1196
        %v1213 = vcombine.high %v1203, %v1203
        %v1214 = vcombine.high %v1210, %v1210
        %v1215 = vcombine.high %v507, %v507
        %v1217 = vunpack.c.l.s4 1966171168
        %v1218 = vunpack.c.0.s8 %v1217
        %v1219 = vlaneseq
        %v1220 = vshrl.u32 %v1219, 7
        %v1221 = vsub.s32 %v1218, %v1220
        %v1222 = vrot.slane %v507, %v1221
        %v1224 = vunpack.c.l.s4 1966171168
        %v1225 = vunpack.c.0.s8 %v1224
        %v1226 = vlaneseq
        %v1227 = vshrl.u32 %v1226, 7
        %v1228 = vsub.s32 %v1225, %v1227
        %v1229 = vrot.slane %v1215, %v1228
        %v1230 = vcombine.high %v1222, %v1222
        %v1231 = vcombine.high %v1229, %v1229
        %v1233 = vunpack.c.l.s4 1966171168
        %v1234 = vunpack.c.0.s8 %v1233
        %v1235 = vlaneseq
        %v1236 = vshrl.u32 %v1235, 7
        %v1237 = vsub.s32 %v1234, %v1236
        %v1238 = vrot.slane %v1222, %v1237
        %v1240 = vunpack.c.l.s4 1966171168
        %v1241 = vunpack.c.0.s8 %v1240
        %v1242 = vlaneseq
        %v1243 = vshrl.u32 %v1242, 7
        %v1244 = vsub.s32 %v1241, %v1243
        %v1245 = vrot.slane %v1229, %v1244
        %v1247 = vunpack.c.l.s4 1966171168
        %v1248 = vunpack.c.0.s8 %v1247
        %v1249 = vlaneseq
        %v1250 = vshrl.u32 %v1249, 7
        %v1251 = vsub.s32 %v1248, %v1250
        %v1252 = vrot.slane %v1230, %v1251
        %v1254 = vunpack.c.l.s4 1966171168
        %v1255 = vunpack.c.0.s8 %v1254
        %v1256 = vlaneseq
        %v1257 = vshrl.u32 %v1256, 7
        %v1258 = vsub.s32 %v1255, %v1257
        %v1259 = vrot.slane %v1231, %v1258
        %v1260 = vcombine.high %v1238, %v1238
        %v1261 = vcombine.high %v1245, %v1245
        %v1262 = vcombine.high %v1252, %v1252
        %v1263 = vcombine.high %v1259, %v1259
        %v1264 = vcombine.high %v510, %v510
        %v1266 = vunpack.c.l.s4 1966171168
        %v1267 = vunpack.c.0.s8 %v1266
        %v1268 = vlaneseq
        %v1269 = vshrl.u32 %v1268, 7
        %v1270 = vsub.s32 %v1267, %v1269
        %v1271 = vrot.slane %v510, %v1270
        %v1273 = vunpack.c.l.s4 1966171168
        %v1274 = vunpack.c.0.s8 %v1273
        %v1275 = vlaneseq
        %v1276 = vshrl.u32 %v1275, 7
        %v1277 = vsub.s32 %v1274, %v1276
        %v1278 = vrot.slane %v1264, %v1277
        %v1279 = vcombine.high %v1271, %v1271
        %v1280 = vcombine.high %v1278, %v1278
        %v1282 = vunpack.c.l.s4 1966171168
        %v1283 = vunpack.c.0.s8 %v1282
        %v1284 = vlaneseq
        %v1285 = vshrl.u32 %v1284, 7
        %v1286 = vsub.s32 %v1283, %v1285
        %v1287 = vrot.slane %v1271, %v1286
        %v1289 = vunpack.c.l.s4 1966171168
        %v1290 = vunpack.c.0.s8 %v1289
        %v1291 = vlaneseq
        %v1292 = vshrl.u32 %v1291, 7
        %v1293 = vsub.s32 %v1290, %v1292
        %v1294 = vrot.slane %v1278, %v1293
        %v1296 = vunpack.c.l.s4 1966171168
        %v1297 = vunpack.c.0.s8 %v1296
        %v1298 = vlaneseq
        %v1299 = vshrl.u32 %v1298, 7
        %v1300 = vsub.s32 %v1297, %v1299
        %v1301 = vrot.slane %v1279, %v1300
        %v1303 = vunpack.c.l.s4 1966171168
        %v1304 = vunpack.c.0.s8 %v1303
        %v1305 = vlaneseq
        %v1306 = vshrl.u32 %v1305, 7
        %v1307 = vsub.s32 %v1304, %v1306
        %v1308 = vrot.slane %v1280, %v1307
        %v1309 = vcombine.high %v1287, %v1287
        %v1310 = vcombine.high %v1294, %v1294
        %v1311 = vcombine.high %v1301, %v1301
        %v1312 = vcombine.high %v1308, %v1308
        %1441 = vst [vmem:[%s203] sm:$0x1] %v552
        %1442 = vst [vmem:[%s203 + $0x1] sm:$0x1] %v566
        %1443 = vst [vmem:[%s203 + $0x2] sm:$0x1] %v574
        %1444 = vst [vmem:[%s203 + $0x3] sm:$0x1] %v576
        %1445 = vst [vmem:[%s203 + $0x4] sm:$0x1] %v559
        %1446 = vst [vmem:[%s203 + $0x5] sm:$0x1] %v573
        %1447 = vst [vmem:[%s203 + $0x6] sm:$0x1] %v575
        %1448 = vst [vmem:[%s203 + $0x7] sm:$0x1] %v577
        %1449 = vst [vmem:[%s203 + $0x8] sm:$0x1] %v601
        %1450 = vst [vmem:[%s203 + $0x9] sm:$0x1] %v615
        %1451 = vst [vmem:[%s203 + $0xa] sm:$0x1] %v623
        %1452 = vst [vmem:[%s203 + $0xb] sm:$0x1] %v625
        %1453 = vst [vmem:[%s203 + $0xc] sm:$0x1] %v608
        %1454 = vst [vmem:[%s203 + $0xd] sm:$0x1] %v622
        %1455 = vst [vmem:[%s203 + $0xe] sm:$0x1] %v624
        %1456 = vst [vmem:[%s203 + $0xf] sm:$0x1] %v626
        %1457 = vst [vmem:[%s203 + $0x10] sm:$0x1] %v650
        %1458 = vst [vmem:[%s203 + $0x11] sm:$0x1] %v664
        %1459 = vst [vmem:[%s203 + $0x12] sm:$0x1] %v672
        %1460 = vst [vmem:[%s203 + $0x13] sm:$0x1] %v674
        %1461 = vst [vmem:[%s203 + $0x14] sm:$0x1] %v657
        %1462 = vst [vmem:[%s203 + $0x15] sm:$0x1] %v671
        %1463 = vst [vmem:[%s203 + $0x16] sm:$0x1] %v673
        %1464 = vst [vmem:[%s203 + $0x17] sm:$0x1] %v675
        %1465 = vst [vmem:[%s203 + $0x18] sm:$0x1] %v699
        %1466 = vst [vmem:[%s203 + $0x19] sm:$0x1] %v713
        %1467 = vst [vmem:[%s203 + $0x1a] sm:$0x1] %v721
        %1468 = vst [vmem:[%s203 + $0x1b] sm:$0x1] %v723
        %1469 = vst [vmem:[%s203 + $0x1c] sm:$0x1] %v706
        %1470 = vst [vmem:[%s203 + $0x1d] sm:$0x1] %v720
        %1471 = vst [vmem:[%s203 + $0x1e] sm:$0x1] %v722
        %1472 = vst [vmem:[%s203 + $0x1f] sm:$0x1] %v724
        %1473 = vst [vmem:[%s203 + $0x20] sm:$0x1] %v748
        %1474 = vst [vmem:[%s203 + $0x21] sm:$0x1] %v762
        %1475 = vst [vmem:[%s203 + $0x22] sm:$0x1] %v770
        %1476 = vst [vmem:[%s203 + $0x23] sm:$0x1] %v772
        %1477 = vst [vmem:[%s203 + $0x24] sm:$0x1] %v755
        %1478 = vst [vmem:[%s203 + $0x25] sm:$0x1] %v769
        %1479 = vst [vmem:[%s203 + $0x26] sm:$0x1] %v771
        %1480 = vst [vmem:[%s203 + $0x27] sm:$0x1] %v773
        %1481 = vst [vmem:[%s203 + $0x28] sm:$0x1] %v797
        %1482 = vst [vmem:[%s203 + $0x29] sm:$0x1] %v811
        %1483 = vst [vmem:[%s203 + $0x2a] sm:$0x1] %v819
        %1484 = vst [vmem:[%s203 + $0x2b] sm:$0x1] %v821
        %1485 = vst [vmem:[%s203 + $0x2c] sm:$0x1] %v804
        %1486 = vst [vmem:[%s203 + $0x2d] sm:$0x1] %v818
        %1487 = vst [vmem:[%s203 + $0x2e] sm:$0x1] %v820
        %1488 = vst [vmem:[%s203 + $0x2f] sm:$0x1] %v822
        %1489 = vst [vmem:[%s203 + $0x30] sm:$0x1] %v846
        %1490 = vst [vmem:[%s203 + $0x31] sm:$0x1] %v860
        %1491 = vst [vmem:[%s203 + $0x32] sm:$0x1] %v868
        %1492 = vst [vmem:[%s203 + $0x33] sm:$0x1] %v870
        %1493 = vst [vmem:[%s203 + $0x34] sm:$0x1] %v853
        %1494 = vst [vmem:[%s203 + $0x35] sm:$0x1] %v867
        %1495 = vst [vmem:[%s203 + $0x36] sm:$0x1] %v869
        %1496 = vst [vmem:[%s203 + $0x37] sm:$0x1] %v871
        %1497 = vst [vmem:[%s203 + $0x38] sm:$0x1] %v895
        %1498 = vst [vmem:[%s203 + $0x39] sm:$0x1] %v909
        %1499 = vst [vmem:[%s203 + $0x3a] sm:$0x1] %v917
        %1500 = vst [vmem:[%s203 + $0x3b] sm:$0x1] %v919
        %1501 = vst [vmem:[%s203 + $0x3c] sm:$0x1] %v902
        %1502 = vst [vmem:[%s203 + $0x3d] sm:$0x1] %v916
        %1503 = vst [vmem:[%s203 + $0x3e] sm:$0x1] %v918
        %1504 = vst [vmem:[%s203 + $0x3f] sm:$0x1] %v920
        %1505 = vst [vmem:[%s203 + $0x40] sm:$0x1] %v944
        %1506 = vst [vmem:[%s203 + $0x41] sm:$0x1] %v958
        %1507 = vst [vmem:[%s203 + $0x42] sm:$0x1] %v966
        %1508 = vst [vmem:[%s203 + $0x43] sm:$0x1] %v968
        %1509 = vst [vmem:[%s203 + $0x44] sm:$0x1] %v951
        %1510 = vst [vmem:[%s203 + $0x45] sm:$0x1] %v965
        %1511 = vst [vmem:[%s203 + $0x46] sm:$0x1] %v967
        %1512 = vst [vmem:[%s203 + $0x47] sm:$0x1] %v969
        %1513 = vst [vmem:[%s203 + $0x48] sm:$0x1] %v993
        %1514 = vst [vmem:[%s203 + $0x49] sm:$0x1] %v1007
        %1515 = vst [vmem:[%s203 + $0x4a] sm:$0x1] %v1015
        %1516 = vst [vmem:[%s203 + $0x4b] sm:$0x1] %v1017
        %1517 = vst [vmem:[%s203 + $0x4c] sm:$0x1] %v1000
        %1518 = vst [vmem:[%s203 + $0x4d] sm:$0x1] %v1014
        %1519 = vst [vmem:[%s203 + $0x4e] sm:$0x1] %v1016
        %1520 = vst [vmem:[%s203 + $0x4f] sm:$0x1] %v1018
        %1521 = vst [vmem:[%s203 + $0x50] sm:$0x1] %v1042
        %1522 = vst [vmem:[%s203 + $0x51] sm:$0x1] %v1056
        %1523 = vst [vmem:[%s203 + $0x52] sm:$0x1] %v1064
        %1524 = vst [vmem:[%s203 + $0x53] sm:$0x1] %v1066
        %1525 = vst [vmem:[%s203 + $0x54] sm:$0x1] %v1049
        %1526 = vst [vmem:[%s203 + $0x55] sm:$0x1] %v1063
        %1527 = vst [vmem:[%s203 + $0x56] sm:$0x1] %v1065
        %1528 = vst [vmem:[%s203 + $0x57] sm:$0x1] %v1067
        %1529 = vst [vmem:[%s203 + $0x58] sm:$0x1] %v1091
        %1530 = vst [vmem:[%s203 + $0x59] sm:$0x1] %v1105
        %1531 = vst [vmem:[%s203 + $0x5a] sm:$0x1] %v1113
        %1532 = vst [vmem:[%s203 + $0x5b] sm:$0x1] %v1115
        %1533 = vst [vmem:[%s203 + $0x5c] sm:$0x1] %v1098
        %1534 = vst [vmem:[%s203 + $0x5d] sm:$0x1] %v1112
        %1535 = vst [vmem:[%s203 + $0x5e] sm:$0x1] %v1114
        %1536 = vst [vmem:[%s203 + $0x5f] sm:$0x1] %v1116
        %1537 = vst [vmem:[%s203 + $0x60] sm:$0x1] %v1140
        %1538 = vst [vmem:[%s203 + $0x61] sm:$0x1] %v1154
        %1539 = vst [vmem:[%s203 + $0x62] sm:$0x1] %v1162
        %1540 = vst [vmem:[%s203 + $0x63] sm:$0x1] %v1164
        %1541 = vst [vmem:[%s203 + $0x64] sm:$0x1] %v1147
        %1542 = vst [vmem:[%s203 + $0x65] sm:$0x1] %v1161
        %1543 = vst [vmem:[%s203 + $0x66] sm:$0x1] %v1163
        %1544 = vst [vmem:[%s203 + $0x67] sm:$0x1] %v1165
        %1545 = vst [vmem:[%s203 + $0x68] sm:$0x1] %v1189
        %1546 = vst [vmem:[%s203 + $0x69] sm:$0x1] %v1203
        %1547 = vst [vmem:[%s203 + $0x6a] sm:$0x1] %v1211
        %1548 = vst [vmem:[%s203 + $0x6b] sm:$0x1] %v1213
        %1549 = vst [vmem:[%s203 + $0x6c] sm:$0x1] %v1196
        %1550 = vst [vmem:[%s203 + $0x6d] sm:$0x1] %v1210
        %1551 = vst [vmem:[%s203 + $0x6e] sm:$0x1] %v1212
        %1552 = vst [vmem:[%s203 + $0x6f] sm:$0x1] %v1214
        %1553 = vst [vmem:[%s203 + $0x70] sm:$0x1] %v1238
        %1554 = vst [vmem:[%s203 + $0x71] sm:$0x1] %v1252
        %1555 = vst [vmem:[%s203 + $0x72] sm:$0x1] %v1260
        %1556 = vst [vmem:[%s203 + $0x73] sm:$0x1] %v1262
        %1557 = vst [vmem:[%s203 + $0x74] sm:$0x1] %v1245
        %1558 = vst [vmem:[%s203 + $0x75] sm:$0x1] %v1259
        %1559 = vst [vmem:[%s203 + $0x76] sm:$0x1] %v1261
        %1560 = vst [vmem:[%s203 + $0x77] sm:$0x1] %v1263
        %1561 = vst [vmem:[%s203 + $0x78] sm:$0x1] %v1287
        %1562 = vst [vmem:[%s203 + $0x79] sm:$0x1] %v1301
        %1563 = vst [vmem:[%s203 + $0x7a] sm:$0x1] %v1309
        %1564 = vst [vmem:[%s203 + $0x7b] sm:$0x1] %v1311
        %1565 = vst [vmem:[%s203 + $0x7c] sm:$0x1] %v1294
        %1566 = vst [vmem:[%s203 + $0x7d] sm:$0x1] %v1308
        %1567 = vst [vmem:[%s203 + $0x7e] sm:$0x1] %v1310
        %1568 = vst [vmem:[%s203 + $0x7f] sm:$0x1] %v1312
        %s1569 = sand.u32 %s114, 1
        %s1570 = scalar_lea.sflag [#allocation3], %s1569
        %s1571 = sand.u32 %s114, 1
        %s1572 = smul.addr %s1571, 128
        %s1573 = scalar_lea.vmem [#allocation2], %s1572
        // Predicated region
        $region33: #{tpu_custom_call.1} parent=31 // pred_check
          %p1574 = pneg %p124
        $region34: #{tpu_custom_call.1} parent=31 // pred_check_branch
          %1576 = sbr.rel (%p1574) target = $region36
        $region35: #{tpu_custom_call.1} parent=31 // pred_region
          %s1577 = smul.u32 128, %s21
          %s1579 = ssub.s32 2048, 2048
          %1580 = vsyncadd %s1570, %s1579
          %s1581 = smul.addr %s1577, 4
          %s1582 = sadd.s32 %s22, %s1581
          %s1583 = smul.addr %s1582, 16
          %s1584 = scalar_lea.hbm %s3, %s1583
          %s1585 = sshll.u32 %s1573, 4
          %s1586 = int_to_ptr.vmem [resolvable:$true] %s1585
          %1591 = dma.vmem_to_hbm [thread:$0]  %s1586, 2048, %s1584, %s1570, 16, 64, 1
        $region36: #{tpu_custom_call.1} parent=31 // pred_fallthru
          _
      $region32: #{tpu_custom_call.1} parent=5 // pred_fallthru
        _
      %p1592 = scmp.le.s32.totalorder 2, %s12
      // Predicated region
      $region37: #{tpu_custom_call.1} parent=5 // pred_check
        %p1593 = pneg %p1592
      $region38: #{tpu_custom_call.1} parent=5 // pred_check_branch
        %1595 = sbr.rel (%p1593) target = $region40
      $region39: #{tpu_custom_call.1} parent=5 // pred_region
        %s1596 = ssub.s32 %s12, 2
        // Predicated region
        $region41: #{tpu_custom_call.1} parent=39 // pred_check
          %p1597 = pneg %p130
        $region42: #{tpu_custom_call.1} parent=39 // pred_check_branch
          %1599 = sbr.rel (%p1597) target = $region44
        $region43: #{tpu_custom_call.1} parent=39 // pred_region
          %s1600 = sand.u32 %s115, 1
          %s1601 = scalar_lea.sflag [#allocation3], %s1600
          %s1602 = sand.u32 %s115, 1
          %s1603 = smul.addr %s1602, 128
          %s1604 = scalar_lea.vmem [#allocation2], %s1603
          %1605 = dma.done %s1601, 2048
        $region44: #{tpu_custom_call.1} parent=39 // pred_fallthru
          _
      $region40: #{tpu_custom_call.1} parent=5 // pred_fallthru
        _
    $region6: #{tpu_custom_call.1} parent=1 // loop_footer
      %s16 = sadd.s32 1, %s12
    $region7: #{tpu_custom_call.1} parent=1 // loop_footer_branch
      %11 = sbr.rel target = $region3
    $region8: #{tpu_custom_call.1} parent=1 // loop_exit
      _
    %1606 = vsyncpa [#allocation3], 1
    %s1607 = scalar_lea.sflag [#allocation3], 1
    %1608 = vsyncpa %s1607, 1

</llo_original>
